<compile_context>
chip_gen: v5e
topology: v5e:2x2
jax: 0.10.0
libtpu: 0.0.40
codegen_flags: <defaults>
</compile_context>

<pallas_src>
import functools

import numpy as np
import jax
import jax.numpy as jnp
from jax.experimental import pallas as pl
from jax.experimental.pallas import tpu as pltpu


# ----------------------------------------------------------------------------
# Parameter setup (glue): build the sin/cos positional-encoding buffer.
# ----------------------------------------------------------------------------
def build_pe(d_model: int, max_len: int) -> jnp.ndarray:
    """Returns pe of shape (max_len, 1, d_model), matching the PyTorch buffer."""
    position = jnp.arange(0, max_len, dtype=jnp.float32)[:, None]            # (L, 1)
    div_term = jnp.exp(
        jnp.arange(0, d_model, 2, dtype=jnp.float32) * (-np.log(10000.0) / d_model)
    )                                                                         # (D/2,)
    pe = jnp.zeros((max_len, d_model), dtype=jnp.float32)
    pe = pe.at[:, 0::2].set(jnp.sin(position * div_term))
    pe = pe.at[:, 1::2].set(jnp.cos(position * div_term))
    return pe[:, None, :]                                                     # (L, 1, D)


# ----------------------------------------------------------------------------
# Pallas kernels
# ----------------------------------------------------------------------------
def pe_add_kernel(x_ref, pe_ref, o_ref):
    # x_ref: (tS, B, D), pe_ref: (tS, 1, D) -> broadcast over the batch axis.
    o_ref[...] = x_ref[...] + pe_ref[...]


def pe_add_dropout_kernel(bits_ref, x_ref, pe_ref, o_ref, *, threshold, scale):
    # Training-mode dropout fused with the positional add.
    # keep with prob (1 - p): raw uint32 compare against a precomputed threshold,
    # survivors scaled by 1/(1-p) via a single select+mul.
    y = x_ref[...] + pe_ref[...]
    keep = bits_ref[...] >= jnp.uint32(threshold)
    o_ref[...] = jnp.where(keep, y * jnp.float32(scale), jnp.zeros_like(y)).astype(
        o_ref.dtype
    )


# ----------------------------------------------------------------------------
# Tiling helper: largest S-tile that keeps double-buffered streams well under
# the scoped VMEM limit on every generation (v5e 16 MiB, v6e/v7x 32 MiB).
# ----------------------------------------------------------------------------
def _choose_tile_s(S, B, D, itemsize, n_streams, budget_bytes=8 << 20, max_tile=512):
    per_row = max(1, B * D * itemsize)
    rows = budget_bytes // (2 * n_streams * per_row)      # 2x for double buffering
    return int(max(1, min(S, min(max_tile, rows))))


# ----------------------------------------------------------------------------
# Wrapper
# ----------------------------------------------------------------------------
def positional_encoding(x, pe, *, dropout_p=0.1, training=False, rng=None):
    """x: (S, B, D) float32, pe: (max_len, 1, D). Returns (S, B, D)."""
    S, B, D = x.shape
    pe_slice = pe[:S]  # (S, 1, D) -- static slice == pe[:x.shape[0]] in the module

    itemsize = jnp.dtype(x.dtype).itemsize
    compiler_params = pltpu.CompilerParams(dimension_semantics=("parallel",))

    def specs(tile_s):
        x_spec = pl.BlockSpec((tile_s, B, D), lambda i: (i, 0, 0))
        pe_spec = pl.BlockSpec((tile_s, 1, D), lambda i: (i, 0, 0))
        return x_spec, pe_spec

    if not training or dropout_p == 0.0:
        # eval: nn.Dropout is identity
        tile_s = _choose_tile_s(S, B, D, itemsize, n_streams=3)
        x_spec, pe_spec = specs(tile_s)
        return pl.pallas_call(
            pe_add_kernel,
            out_shape=jax.ShapeDtypeStruct(x.shape, x.dtype),
            grid=(pl.cdiv(S, tile_s),),
            in_specs=[x_spec, pe_spec],
            out_specs=x_spec,
            compiler_params=compiler_params,
        )(x, pe_slice)

    if rng is None:
        rng = jax.random.PRNGKey(0)
    # Random bits generated in plain JAX (glue); mask + scale fused in-kernel.
    bits = jax.random.bits(rng, x.shape, jnp.uint32)
    threshold = int(round(float(dropout_p) * (1 << 32)))
    scale = 1.0 / (1.0 - float(dropout_p))

    tile_s = _choose_tile_s(S, B, D, itemsize, n_streams=4)
    x_spec, pe_spec = specs(tile_s)
    return pl.pallas_call(
        functools.partial(pe_add_dropout_kernel, threshold=threshold, scale=scale),
        out_shape=jax.ShapeDtypeStruct(x.shape, x.dtype),
        grid=(pl.cdiv(S, tile_s),),
        in_specs=[x_spec, x_spec, pe_spec],
        out_specs=x_spec,
        compiler_params=compiler_params,
    )(bits, x, pe_slice)


# ----------------------------------------------------------------------------
# Main
# ----------------------------------------------------------------------------
if __name__ == "__main__":
    d_model = 128      # lane-dense last dim (multiple of 128)
    max_len = 64       # small stand-in for the default 5000
    seq_len = 16
    batch = 2
    dropout_p = 0.1

    key = jax.random.PRNGKey(0)
    kx, kdrop = jax.random.split(key)
    x = jax.random.normal(kx, (seq_len, batch, d_model), dtype=jnp.float32)

    pe = build_pe(d_model, max_len)
    ref = x + pe[:seq_len]  # broadcast over batch, same as the PyTorch forward

    # --- eval mode (dropout = identity): check exactly against the reference ---
    out_eval = positional_encoding(x, pe, dropout_p=dropout_p, training=False)
    out_eval = jax.block_until_ready(out_eval)
    assert out_eval.shape == x.shape and out_eval.dtype == x.dtype
    np.testing.assert_allclose(np.asarray(out_eval), np.asarray(ref), rtol=1e-6, atol=1e-6)

    # --- training mode: mask is deterministic (bits built from kdrop outside the
    #     kernel), so we can check the output exactly. ---
    out_train = positional_encoding(x, pe, dropout_p=dropout_p, training=True, rng=kdrop)
    out_train = jax.block_until_ready(out_train)

    bits_ref = np.asarray(jax.random.bits(kdrop, x.shape, jnp.uint32))
    threshold = np.uint32(int(round(dropout_p * (1 << 32))))
    keep = bits_ref >= threshold
    expected = np.where(keep, np.asarray(ref) / (1.0 - dropout_p), 0.0).astype(np.float32)
    assert out_train.shape == x.shape
    assert np.all(np.isfinite(np.asarray(out_train)))
    np.testing.assert_allclose(np.asarray(out_train), expected, rtol=1e-5, atol=1e-6)

    print("KERNEL_OK")
</pallas_src>

<mosaic_0001>
module attributes {stable_mosaic.version = 11 : i64} {
  func.func @pe_add_kernel(%arg0: i32, %arg1: memref<16x2x128xf32, #tpu.memory_space<vmem>>, %arg2: memref<16x1x128xf32, #tpu.memory_space<vmem>>, %arg3: memref<16x2x128xf32, #tpu.memory_space<vmem>>) attributes {dimension_semantics = [#tpu.dimension_semantics<parallel>], iteration_bounds = array<i64: 1>, scalar_prefetch = 0 : i64, scratch_operands = 0 : i64, tpu.core_type = #tpu.core_type<tc>, window_params = [{transform_indices = @transform_0, window_bounds = array<i64: 16, 2, 128>}, {transform_indices = @transform_1, window_bounds = array<i64: 16, 1, 128>}, {transform_indices = @transform_2, window_bounds = array<i64: 16, 2, 128>}]} {
    %c0 = arith.constant 0 : index
    %c0_0 = arith.constant 0 : index
    %c0_1 = arith.constant 0 : index
    %0 = vector.load %arg1[%c0, %c0_0, %c0_1] : memref<16x2x128xf32, #tpu.memory_space<vmem>>, vector<16x2x128xf32>
    %c0_2 = arith.constant 0 : index
    %c0_3 = arith.constant 0 : index
    %c0_4 = arith.constant 0 : index
    %1 = vector.load %arg2[%c0_2, %c0_3, %c0_4] : memref<16x1x128xf32, #tpu.memory_space<vmem>>, vector<16x1x128xf32>
    %2 = vector.broadcast %1 : vector<16x1x128xf32> to vector<16x2x128xf32>
    %3 = arith.addf %0, %2 : vector<16x2x128xf32>
    %c0_5 = arith.constant 0 : index
    %c0_6 = arith.constant 0 : index
    %c0_7 = arith.constant 0 : index
    %4 = vector.load %arg3[%c0_5, %c0_6, %c0_7] : memref<16x2x128xf32, #tpu.memory_space<vmem>>, vector<16x2x128xf32>
    tpu.vector_store %arg3[%c0_5, %c0_6, %c0_7], %3 {strides = array<i32>} : memref<16x2x128xf32, #tpu.memory_space<vmem>>, vector<16x2x128xf32>,
    return
  }
  func.func @transform_0(%arg0: i32) -> (i32, i32, i32) {
    %c0_i32 = arith.constant 0 : i32
    %c0_i32_0 = arith.constant 0 : i32
    %c0_i32_1 = arith.constant 0 : i32
    return %arg0, %c0_i32, %c0_i32_0 : i32, i32, i32
  }
  func.func @transform_1(%arg0: i32) -> (i32, i32, i32) {
    %c0_i32 = arith.constant 0 : i32
    %c0_i32_0 = arith.constant 0 : i32
    %c0_i32_1 = arith.constant 0 : i32
    return %arg0, %c0_i32, %c0_i32_0 : i32, i32, i32
  }
  func.func @transform_2(%arg0: i32) -> (i32, i32, i32) {
    %c0_i32 = arith.constant 0 : i32
    %c0_i32_0 = arith.constant 0 : i32
    %c0_i32_1 = arith.constant 0 : i32
    return %arg0, %c0_i32, %c0_i32_0 : i32, i32, i32
  }
}

</mosaic_0001>

<llo_original>
// kernel: tpu_custom_call.1
$region0: #{tpu_custom_call.1}
  #allocation0 [shape = 'u32[]', space=smem, size = 0x4, offset = 0x4, fixed_abs, tag = 'smem constant byte address 0x4 - core index']
  #allocation1 [shape = 'u32[72,128]{1,0:T(1,128)}', space=vmem, size = 0x9000, scoped, tag = 'internal scratch']
  %s0 = inlined_call_operand.hbm [shape: f32[16,2,128], index: 0, kind: input, shape index: {}]
  %s1 = inlined_call_operand.hbm [shape: f32[16,1,128], index: 1, kind: input, shape index: {}]
  %s2 = inlined_call_operand.hbm [shape: f32[16,2,128], index: 2, kind: output, shape index: {}]
  %s3 = sld [smem:[#allocation0]]
  $region26: #{tpu_custom_call.1} parent=0
    _
  %s5 = ssub.s32 1, %s3
  %s6 = scalar_select 0, %s5, %s3
  $region1: #{tpu_custom_call.1} parent=0
    #allocation2 [shape = 'u8[16384]{0}', space=vmem, size = 0x4000, scoped, tag = 'input window, operand 0, single buffered']
    #allocation3 [shape = 's32[1]{0}', space=sflag, size = 0x4, scoped, tag = 'scoped memory for tpu_custom_call.1']
    #allocation4 [shape = 's32[1]{0}', space=sflag, size = 0x4, scoped, tag = 'scoped memory for tpu_custom_call.1']
    #allocation5 [shape = 'u8[8192]{0}', space=vmem, size = 0x2000, scoped, tag = 'input window, operand 1, single buffered']
    #allocation6 [shape = 's32[1]{0}', space=sflag, size = 0x4, scoped, tag = 'scoped memory for tpu_custom_call.1']
    #allocation7 [shape = 'u8[16384]{0}', space=vmem, size = 0x4000, scoped, tag = 'output window, operand 0, single buffered']
    %7 = vsyncpa [#allocation3], 0
    %8 = vsyncpa [#allocation6], 0
    %9 = vsyncpa [#allocation4], 0
    // Predicated region
    $region2: #{tpu_custom_call.1} parent=1 // pred_check
      _
    $region3: #{tpu_custom_call.1} parent=1 // pred_check_branch
      %11 = sbr.rel (0) target = $region5
    $region4: #{tpu_custom_call.1} parent=1 // pred_region
      %13 = vsyncadd [#allocation3], 0
      %s14 = sshll.u32 %s0, 4
      %s15 = int_to_ptr.hbm [resolvable:$true] %s14
      %s16 = sshll.u32 [#allocation2], 4
      %s17 = int_to_ptr.vmem [resolvable:$true] %s16
      %22 = dma.hbm_to_vmem [thread:$0]  %s15, 512, %s17, [#allocation3], 32, 32, 2
    $region5: #{tpu_custom_call.1} parent=1 // pred_fallthru
      _
    // Predicated region
    $region6: #{tpu_custom_call.1} parent=1 // pred_check
      _
    $region7: #{tpu_custom_call.1} parent=1 // pred_check_branch
      %24 = sbr.rel (0) target = $region9
    $region8: #{tpu_custom_call.1} parent=1 // pred_region
      %26 = vsyncadd [#allocation6], 0
      %s27 = sshll.u32 %s1, 4
      %s28 = int_to_ptr.hbm [resolvable:$true] %s27
      %s29 = sshll.u32 [#allocation5], 4
      %s30 = int_to_ptr.vmem [resolvable:$true] %s29
      %35 = dma.hbm_to_vmem [thread:$0]  %s28, 256, %s30, [#allocation6], 16, 16, 1
    $region9: #{tpu_custom_call.1} parent=1 // pred_fallthru
      _
    // Predicated region
    $region10: #{tpu_custom_call.1} parent=1 // pred_check
      _
    $region11: #{tpu_custom_call.1} parent=1 // pred_check_branch
      %37 = sbr.rel (0) target = $region13
    $region12: #{tpu_custom_call.1} parent=1 // pred_region
      %39 = dma.done [#allocation3], 512
    $region13: #{tpu_custom_call.1} parent=1 // pred_fallthru
      _
    // Predicated region
    $region14: #{tpu_custom_call.1} parent=1 // pred_check
      _
    $region15: #{tpu_custom_call.1} parent=1 // pred_check_branch
      %41 = sbr.rel (0) target = $region17
    $region16: #{tpu_custom_call.1} parent=1 // pred_region
      %43 = dma.done [#allocation6], 256
    $region17: #{tpu_custom_call.1} parent=1 // pred_fallthru
      _
    %v44 = vld [vmem:[#allocation2] sm:$0x3]
    %v45 = vld [vmem:[#allocation2 + $0x2] sm:$0x3]
    %v46 = vld [vmem:[#allocation2 + $0x4] sm:$0x3]
    %v47 = vld [vmem:[#allocation2 + $0x6] sm:$0x3]
    %v48 = vld [vmem:[#allocation2 + $0x8] sm:$0x3]
    %v49 = vld [vmem:[#allocation2 + $0xa] sm:$0x3]
    %v50 = vld [vmem:[#allocation2 + $0xc] sm:$0x3]
    %v51 = vld [vmem:[#allocation2 + $0xe] sm:$0x3]
    %v52 = vld [vmem:[#allocation2 + $0x10] sm:$0x3]
    %v53 = vld [vmem:[#allocation2 + $0x12] sm:$0x3]
    %v54 = vld [vmem:[#allocation2 + $0x14] sm:$0x3]
    %v55 = vld [vmem:[#allocation2 + $0x16] sm:$0x3]
    %v56 = vld [vmem:[#allocation2 + $0x18] sm:$0x3]
    %v57 = vld [vmem:[#allocation2 + $0x1a] sm:$0x3]
    %v58 = vld [vmem:[#allocation2 + $0x1c] sm:$0x3]
    %v59 = vld [vmem:[#allocation2 + $0x1e] sm:$0x3]
    %v60 = vld [vmem:[#allocation5] sm:$0x1]
    %v61 = vld [vmem:[#allocation5 + $0x1] sm:$0x1]
    %v62 = vld [vmem:[#allocation5 + $0x2] sm:$0x1]
    %v63 = vld [vmem:[#allocation5 + $0x3] sm:$0x1]
    %v64 = vld [vmem:[#allocation5 + $0x4] sm:$0x1]
    %v65 = vld [vmem:[#allocation5 + $0x5] sm:$0x1]
    %v66 = vld [vmem:[#allocation5 + $0x6] sm:$0x1]
    %v67 = vld [vmem:[#allocation5 + $0x7] sm:$0x1]
    %v68 = vld [vmem:[#allocation5 + $0x8] sm:$0x1]
    %v69 = vld [vmem:[#allocation5 + $0x9] sm:$0x1]
    %v70 = vld [vmem:[#allocation5 + $0xa] sm:$0x1]
    %v71 = vld [vmem:[#allocation5 + $0xb] sm:$0x1]
    %v72 = vld [vmem:[#allocation5 + $0xc] sm:$0x1]
    %v73 = vld [vmem:[#allocation5 + $0xd] sm:$0x1]
    %v74 = vld [vmem:[#allocation5 + $0xe] sm:$0x1]
    %v75 = vld [vmem:[#allocation5 + $0xf] sm:$0x1]
    %v92 = vperm.slane %v60, 0
    %v93 = vperm.slane %v61, 0
    %v94 = vperm.slane %v62, 0
    %v95 = vperm.slane %v63, 0
    %v96 = vperm.slane %v64, 0
    %v97 = vperm.slane %v65, 0
    %v98 = vperm.slane %v66, 0
    %v99 = vperm.slane %v67, 0
    %v100 = vperm.slane %v68, 0
    %v101 = vperm.slane %v69, 0
    %v102 = vperm.slane %v70, 0
    %v103 = vperm.slane %v71, 0
    %v104 = vperm.slane %v72, 0
    %v105 = vperm.slane %v73, 0
    %v106 = vperm.slane %v74, 0
    %v107 = vperm.slane %v75, 0
    %v124 = vadd.f32 %v44, %v92
    %v125 = vadd.f32 %v45, %v93
    %v126 = vadd.f32 %v46, %v94
    %v127 = vadd.f32 %v47, %v95
    %v128 = vadd.f32 %v48, %v96
    %v129 = vadd.f32 %v49, %v97
    %v130 = vadd.f32 %v50, %v98
    %v131 = vadd.f32 %v51, %v99
    %v132 = vadd.f32 %v52, %v100
    %v133 = vadd.f32 %v53, %v101
    %v134 = vadd.f32 %v54, %v102
    %v135 = vadd.f32 %v55, %v103
    %v136 = vadd.f32 %v56, %v104
    %v137 = vadd.f32 %v57, %v105
    %v138 = vadd.f32 %v58, %v106
    %v139 = vadd.f32 %v59, %v107
    %140 = vst [vmem:[#allocation7] sm:$0x3] %v124
    %141 = vst [vmem:[#allocation7 + $0x2] sm:$0x3] %v125
    %142 = vst [vmem:[#allocation7 + $0x4] sm:$0x3] %v126
    %143 = vst [vmem:[#allocation7 + $0x6] sm:$0x3] %v127
    %144 = vst [vmem:[#allocation7 + $0x8] sm:$0x3] %v128
    %145 = vst [vmem:[#allocation7 + $0xa] sm:$0x3] %v129
    %146 = vst [vmem:[#allocation7 + $0xc] sm:$0x3] %v130
    %147 = vst [vmem:[#allocation7 + $0xe] sm:$0x3] %v131
    %148 = vst [vmem:[#allocation7 + $0x10] sm:$0x3] %v132
    %149 = vst [vmem:[#allocation7 + $0x12] sm:$0x3] %v133
    %150 = vst [vmem:[#allocation7 + $0x14] sm:$0x3] %v134
    %151 = vst [vmem:[#allocation7 + $0x16] sm:$0x3] %v135
    %152 = vst [vmem:[#allocation7 + $0x18] sm:$0x3] %v136
    %153 = vst [vmem:[#allocation7 + $0x1a] sm:$0x3] %v137
    %154 = vst [vmem:[#allocation7 + $0x1c] sm:$0x3] %v138
    %155 = vst [vmem:[#allocation7 + $0x1e] sm:$0x3] %v139
    // Predicated region
    $region18: #{tpu_custom_call.1} parent=1 // pred_check
      _
    $region19: #{tpu_custom_call.1} parent=1 // pred_check_branch
      %157 = sbr.rel (0) target = $region21
    $region20: #{tpu_custom_call.1} parent=1 // pred_region
      %159 = vsyncadd [#allocation4], 0
      %s160 = sshll.u32 [#allocation7], 4
      %s161 = int_to_ptr.vmem [resolvable:$true] %s160
      %s162 = sshll.u32 %s2, 4
      %s163 = int_to_ptr.hbm [resolvable:$true] %s162
      %168 = dma.vmem_to_hbm [thread:$0]  %s161, 512, %s163, [#allocation4], 32, 32, 2
    $region21: #{tpu_custom_call.1} parent=1 // pred_fallthru
      _
    // Predicated region
    $region22: #{tpu_custom_call.1} parent=1 // pred_check
      _
    $region23: #{tpu_custom_call.1} parent=1 // pred_check_branch
      %170 = sbr.rel (0) target = $region25
    $region24: #{tpu_custom_call.1} parent=1 // pred_region
      %172 = dma.done [#allocation4], 512
    $region25: #{tpu_custom_call.1} parent=1 // pred_fallthru
      _
    %173 = vsyncpa [#allocation3], 1
    %174 = vsyncpa [#allocation6], 1
    %175 = vsyncpa [#allocation4], 1

</llo_original>
